<compile_context>
chip_gen: v6e
topology: v6e:2x2x1
jax: 0.10.0
libtpu: 0.0.40
codegen_flags: <defaults>
</compile_context>

<pallas_src>
import jax
import jax.numpy as jnp
from jax.experimental import pallas as pl
from jax.experimental.pallas import tpu as pltpu


def _round_up(v, m):
    return pl.cdiv(v, m) * m


def tabular_model_kernel(x_ref, w1_ref, b1_ref, w2_ref, b2_ref,
                         wc_ref, bc_ref, out_ref):
    # Encoder layer 1: Linear(F -> E_pad) + ReLU  (bf16 x bf16 -> f32 accumulation)
    h1 = jnp.dot(x_ref[...], w1_ref[...],
                 preferred_element_type=jnp.float32) + b1_ref[...]
    h1 = jnp.maximum(h1, 0.0).astype(w2_ref.dtype)
    # Encoder layer 2: Linear(E_pad -> E_pad) + ReLU
    h2 = jnp.dot(h1, w2_ref[...],
                 preferred_element_type=jnp.float32) + b2_ref[...]
    h2 = jnp.maximum(h2, 0.0).astype(wc_ref.dtype)
    # Classifier: Linear(E_pad -> C).  Only the C real columns are computed and
    # stored, so no padded logits ever reach HBM.
    logits = jnp.dot(h2, wc_ref[...],
                     preferred_element_type=jnp.float32) + bc_ref[...]
    out_ref[...] = logits.astype(out_ref.dtype)


def tabular_model(x, params, *, batch_tile=4096, compute_dtype=jnp.bfloat16):
    B, F = x.shape
    E = params["w1"].shape[1]
    C = params["wc"].shape[1]
    E_pad = _round_up(E, 128)   # lane-dense hidden activations / full-depth K

    # ---- batch tiling --------------------------------------------------------
    b_round = _round_up(B, 16)                              # 16 rows per bf16 vreg
    n_steps = max(1, pl.cdiv(b_round, max(16, batch_tile)))
    if n_steps == 1 and b_round >= 512:
        n_steps = 2      # >= 2 grid steps so both v7x TensorCores get work
    bt = _round_up(pl.cdiv(b_round, n_steps), 16)
    B_pad = bt * n_steps

    # ---- parameter packing (zero-padded to E_pad; biases kept f32) -----------
    def pad2(a, rows, cols, dtype):
        a = a.astype(dtype)
        if a.shape == (rows, cols):
            return a
        return jnp.zeros((rows, cols), dtype).at[:a.shape[0], :a.shape[1]].set(a)

    w1 = pad2(params["w1"], F, E_pad, compute_dtype)
    w2 = pad2(params["w2"], E_pad, E_pad, compute_dtype)
    wc = pad2(params["wc"], E_pad, C, compute_dtype)
    b1 = pad2(params["b1"], 1, E_pad, jnp.float32)
    b2 = pad2(params["b2"], 1, E_pad, jnp.float32)
    bc = params["bc"].astype(jnp.float32).reshape(1, C)

    xp = x.astype(compute_dtype)
    if B_pad != B:
        xp = jnp.zeros((B_pad, F), compute_dtype).at[:B].set(xp)

    def rep(shape):
        # Whole-array block with a constant index map -> DMA'd once, never refetched.
        return pl.BlockSpec(shape, lambda i: (0,) * len(shape))

    # ---- VMEM / cost accounting ----------------------------------------------
    itemsize = jnp.dtype(compute_dtype).itemsize
    lanes = lambda n: _round_up(n, 128)
    weight_bytes = ((lanes(F) * E_pad + E_pad * E_pad + E_pad * lanes(C)) * itemsize
                    + 3 * E_pad * 4)
    per_step_io = bt * lanes(F) * itemsize + bt * lanes(C) * 4   # x block + out block
    intermediates = 4 * bt * E_pad * 4                           # h1/h2/logits/slack (f32)
    vmem_limit = int(min(48 * 1024 * 1024,
                         max(32 * 1024 * 1024,
                             2 * per_step_io + 2 * weight_bytes + intermediates)))

    flops = 2 * B_pad * (F * E_pad + E_pad * E_pad + E_pad * C)
    bytes_accessed = int(B_pad * F * itemsize       # x
                         + weight_bytes             # weights + biases
                         + B_pad * C * 4)           # output (unpadded)

    out = pl.pallas_call(
        tabular_model_kernel,
        out_shape=jax.ShapeDtypeStruct((B_pad, C), jnp.float32),
        grid_spec=pl.GridSpec(
            grid=(B_pad // bt,),
            in_specs=[
                pl.BlockSpec((bt, F), lambda i: (i, 0)),   # x (batch-tiled)
                rep((F, E_pad)),       # w1
                rep((1, E_pad)),       # b1
                rep((E_pad, E_pad)),   # w2
                rep((1, E_pad)),       # b2
                rep((E_pad, C)),       # wc
                rep((1, C)),           # bc
            ],
            out_specs=pl.BlockSpec((bt, C), lambda i: (i, 0)),
        ),
        compiler_params=pltpu.CompilerParams(
            dimension_semantics=("parallel",),
            vmem_limit_bytes=vmem_limit),
        cost_estimate=pl.CostEstimate(
            flops=flops, transcendentals=0, bytes_accessed=bytes_accessed),
    )(xp, w1, b1, w2, b2, wc, bc)

    # Only batch padding (if any) is stripped; the output was never lane-padded.
    return out[:B] if B_pad != B else out


def init_params(key, input_size, embedding_dim, num_classes):
    # Deterministic init mimicking PyTorch nn.Linear default (U[-1/sqrt(fan_in), +]).
    ks = jax.random.split(key, 6)

    def lin(kw, kb, fan_in, fan_out):
        bound = 1.0 / jnp.sqrt(fan_in)
        w = jax.random.uniform(kw, (fan_in, fan_out), jnp.float32, -bound, bound)
        b = jax.random.uniform(kb, (1, fan_out), jnp.float32, -bound, bound)
        return w, b

    w1, b1 = lin(ks[0], ks[1], input_size, embedding_dim)
    w2, b2 = lin(ks[2], ks[3], embedding_dim, embedding_dim)
    wc, bc = lin(ks[4], ks[5], embedding_dim, num_classes)
    return {"w1": w1, "b1": b1, "w2": w2, "b2": b2, "wc": wc, "bc": bc}


def reference(x, p):
    # Pure-f32 reference (PyTorch-equivalent forward pass).
    h1 = jnp.maximum(x @ p["w1"] + p["b1"], 0.0)
    h2 = jnp.maximum(h1 @ p["w2"] + p["b2"], 0.0)
    return h2 @ p["wc"] + p["bc"]


if __name__ == "__main__":
    batch, input_size, embedding_dim, num_classes = 8, 32, 64, 4

    key = jax.random.PRNGKey(0)
    k_x, k_p = jax.random.split(key)
    x = jax.random.normal(k_x, (batch, input_size), jnp.float32)
    params = init_params(k_p, input_size, embedding_dim, num_classes)

    out = jax.block_until_ready(tabular_model(x, params))
    ref = reference(x, params)

    assert out.shape == (batch, num_classes)
    # bf16 inputs/weights with f32 accumulation: compare to the f32 reference with
    # a tolerance that covers bf16 quantization (~0.4% relative).
    assert jnp.allclose(out, ref, atol=5e-2, rtol=5e-2)

    print("KERNEL_OK")
</pallas_src>

<mosaic_0001>
module attributes {stable_mosaic.version = 11 : i64} {
  func.func @tabular_model_kernel(%arg0: i32, %arg1: memref<16x32xbf16, #tpu.memory_space<vmem>>, %arg2: memref<32x128xbf16, #tpu.memory_space<vmem>>, %arg3: memref<1x128xf32, #tpu.memory_space<vmem>>, %arg4: memref<128x128xbf16, #tpu.memory_space<vmem>>, %arg5: memref<1x128xf32, #tpu.memory_space<vmem>>, %arg6: memref<128x4xbf16, #tpu.memory_space<vmem>>, %arg7: memref<1x4xf32, #tpu.memory_space<vmem>>, %arg8: memref<16x4xf32, #tpu.memory_space<vmem>>) attributes {dimension_semantics = [#tpu.dimension_semantics<parallel>], iteration_bounds = array<i64: 1>, scalar_prefetch = 0 : i64, scratch_operands = 0 : i64, tpu.core_type = #tpu.core_type<tc>, window_params = [{transform_indices = @transform_0, window_bounds = array<i64: 16, 32>}, {pipeline_mode = #tpu.pipeline_mode<synchronous>, transform_indices = @transform_1, window_bounds = array<i64: 32, 128>}, {pipeline_mode = #tpu.pipeline_mode<synchronous>, transform_indices = @transform_2, window_bounds = array<i64: 1, 128>}, {pipeline_mode = #tpu.pipeline_mode<synchronous>, transform_indices = @transform_3, window_bounds = array<i64: 128, 128>}, {pipeline_mode = #tpu.pipeline_mode<synchronous>, transform_indices = @transform_4, window_bounds = array<i64: 1, 128>}, {pipeline_mode = #tpu.pipeline_mode<synchronous>, transform_indices = @transform_5, window_bounds = array<i64: 128, 4>}, {pipeline_mode = #tpu.pipeline_mode<synchronous>, transform_indices = @transform_6, window_bounds = array<i64: 1, 4>}, {transform_indices = @transform_7, window_bounds = array<i64: 16, 4>}]} {
    %c0 = arith.constant 0 : index
    %c0_0 = arith.constant 0 : index
    %0 = vector.load %arg1[%c0, %c0_0] : memref<16x32xbf16, #tpu.memory_space<vmem>>, vector<16x32xbf16>
    %c0_1 = arith.constant 0 : index
    %c0_2 = arith.constant 0 : index
    %1 = vector.load %arg2[%c0_1, %c0_2] : memref<32x128xbf16, #tpu.memory_space<vmem>>, vector<32x128xbf16>
    %cst = arith.constant dense<0.000000e+00> : vector<16x128xf32>
    %2 = tpu.matmul %0, %1, %cst {dimension_numbers = #tpu.dot_dimension_numbers<[1], [0], [0], [1], [0, 0, 1, 1], [], []>} : vector<16x32xbf16>, vector<32x128xbf16>, vector<16x128xf32> -> vector<16x128xf32>
    %c0_3 = arith.constant 0 : index
    %c0_4 = arith.constant 0 : index
    %3 = vector.load %arg3[%c0_3, %c0_4] : memref<1x128xf32, #tpu.memory_space<vmem>>, vector<1x128xf32>
    %4 = vector.broadcast %3 : vector<1x128xf32> to vector<16x128xf32>
    %5 = arith.addf %2, %4 : vector<16x128xf32>
    %cst_5 = arith.constant 0.000000e+00 : f32
    %6 = vector.broadcast %cst_5 : f32 to vector<16x128xf32>
    %7 = arith.maximumf %5, %6 : vector<16x128xf32>
    %8 = arith.truncf %7 : vector<16x128xf32> to vector<16x128xbf16>
    %c0_6 = arith.constant 0 : index
    %c0_7 = arith.constant 0 : index
    %9 = vector.load %arg4[%c0_6, %c0_7] : memref<128x128xbf16, #tpu.memory_space<vmem>>, vector<128x128xbf16>
    %cst_8 = arith.constant dense<0.000000e+00> : vector<16x128xf32>
    %10 = tpu.matmul %8, %9, %cst_8 {dimension_numbers = #tpu.dot_dimension_numbers<[1], [0], [0], [1], [0, 0, 1, 1], [], []>} : vector<16x128xbf16>, vector<128x128xbf16>, vector<16x128xf32> -> vector<16x128xf32>
    %c0_9 = arith.constant 0 : index
    %c0_10 = arith.constant 0 : index
    %11 = vector.load %arg5[%c0_9, %c0_10] : memref<1x128xf32, #tpu.memory_space<vmem>>, vector<1x128xf32>
    %12 = vector.broadcast %11 : vector<1x128xf32> to vector<16x128xf32>
    %13 = arith.addf %10, %12 : vector<16x128xf32>
    %cst_11 = arith.constant 0.000000e+00 : f32
    %14 = vector.broadcast %cst_11 : f32 to vector<16x128xf32>
    %15 = arith.maximumf %13, %14 : vector<16x128xf32>
    %16 = arith.truncf %15 : vector<16x128xf32> to vector<16x128xbf16>
    %c0_12 = arith.constant 0 : index
    %c0_13 = arith.constant 0 : index
    %17 = vector.load %arg6[%c0_12, %c0_13] : memref<128x4xbf16, #tpu.memory_space<vmem>>, vector<128x4xbf16>
    %cst_14 = arith.constant dense<0.000000e+00> : vector<16x4xf32>
    %18 = tpu.matmul %16, %17, %cst_14 {dimension_numbers = #tpu.dot_dimension_numbers<[1], [0], [0], [1], [0, 0, 1, 1], [], []>} : vector<16x128xbf16>, vector<128x4xbf16>, vector<16x4xf32> -> vector<16x4xf32>
    %c0_15 = arith.constant 0 : index
    %c0_16 = arith.constant 0 : index
    %19 = vector.load %arg7[%c0_15, %c0_16] : memref<1x4xf32, #tpu.memory_space<vmem>>, vector<1x4xf32>
    %20 = vector.broadcast %19 : vector<1x4xf32> to vector<16x4xf32>
    %21 = arith.addf %18, %20 : vector<16x4xf32>
    %c0_17 = arith.constant 0 : index
    %c0_18 = arith.constant 0 : index
    %22 = vector.load %arg8[%c0_17, %c0_18] : memref<16x4xf32, #tpu.memory_space<vmem>>, vector<16x4xf32>
    tpu.vector_store %arg8[%c0_17, %c0_18], %21 {strides = array<i32>} : memref<16x4xf32, #tpu.memory_space<vmem>>, vector<16x4xf32>,
    return
  }
  func.func @transform_0(%arg0: i32) -> (i32, i32) {
    %c0_i32 = arith.constant 0 : i32
    %c0_i32_0 = arith.constant 0 : i32
    return %arg0, %c0_i32 : i32, i32
  }
  func.func @transform_1(%arg0: i32) -> (i32, i32) {
    %c0_i32 = arith.constant 0 : i32
    %c0_i32_0 = arith.constant 0 : i32
    %c0_i32_1 = arith.constant 0 : i32
    return %c0_i32, %c0_i32_0 : i32, i32
  }
  func.func @transform_2(%arg0: i32) -> (i32, i32) {
    %c0_i32 = arith.constant 0 : i32
    %c0_i32_0 = arith.constant 0 : i32
    %c0_i32_1 = arith.constant 0 : i32
    return %c0_i32, %c0_i32_0 : i32, i32
  }
  func.func @transform_3(%arg0: i32) -> (i32, i32) {
    %c0_i32 = arith.constant 0 : i32
    %c0_i32_0 = arith.constant 0 : i32
    %c0_i32_1 = arith.constant 0 : i32
    return %c0_i32, %c0_i32_0 : i32, i32
  }
  func.func @transform_4(%arg0: i32) -> (i32, i32) {
    %c0_i32 = arith.constant 0 : i32
    %c0_i32_0 = arith.constant 0 : i32
    %c0_i32_1 = arith.constant 0 : i32
    return %c0_i32, %c0_i32_0 : i32, i32
  }
  func.func @transform_5(%arg0: i32) -> (i32, i32) {
    %c0_i32 = arith.constant 0 : i32
    %c0_i32_0 = arith.constant 0 : i32
    %c0_i32_1 = arith.constant 0 : i32
    return %c0_i32, %c0_i32_0 : i32, i32
  }
  func.func @transform_6(%arg0: i32) -> (i32, i32) {
    %c0_i32 = arith.constant 0 : i32
    %c0_i32_0 = arith.constant 0 : i32
    %c0_i32_1 = arith.constant 0 : i32
    return %c0_i32, %c0_i32_0 : i32, i32
  }
  func.func @transform_7(%arg0: i32) -> (i32, i32) {
    %c0_i32 = arith.constant 0 : i32
    %c0_i32_0 = arith.constant 0 : i32
    return %arg0, %c0_i32 : i32, i32
  }
}

</mosaic_0001>

<llo_original>
// kernel: tpu_custom_call.1
$region0: #{tpu_custom_call.1}
  #allocation0 [shape = 'u32[]', space=smem, size = 0x4, offset = 0x4, fixed_abs, tag = 'smem constant byte address 0x4 - core index']
  #allocation1 [shape = 'u32[144,128]{1,0:T(1,128)}', space=vmem, size = 0x12000, scoped, tag = 'internal scratch']
  %s0 = inlined_call_operand.hbm [shape: bf16[16,32], index: 0, kind: input, shape index: {}]
  %s1 = inlined_call_operand.hbm [shape: bf16[32,128], index: 1, kind: input, shape index: {}]
  %s2 = inlined_call_operand.vmem [shape: f32[1,128], index: 2, kind: input, shape index: {}]
  %s3 = inlined_call_operand.vmem [shape: bf16[128,128], index: 3, kind: input, shape index: {}]
  %s4 = inlined_call_operand.vmem [shape: f32[1,128], index: 4, kind: input, shape index: {}]
  %s5 = inlined_call_operand.vmem [shape: bf16[128,4], index: 5, kind: input, shape index: {}]
  %s6 = inlined_call_operand.vmem [shape: f32[1,4], index: 6, kind: input, shape index: {}]
  %s7 = inlined_call_operand.vmem [shape: f32[16,4], index: 7, kind: output, shape index: {}]
  %s8 = sld [smem:[#allocation0]]
  $region46: #{tpu_custom_call.1} parent=0
    _
  %s10 = ssub.s32 1, %s8
  %s11 = scalar_select 0, %s10, %s8
  $region1: #{tpu_custom_call.1} parent=0
    #allocation2 [shape = 'u8[4096]{0}', space=vmem, size = 0x1000, scoped, tag = 'input window, operand 0, single buffered']
    #allocation3 [shape = 's32[1]{0}', space=sflag, size = 0x4, scoped, tag = 'scoped memory for tpu_custom_call.1']
    #allocation4 [shape = 'u8[8192]{0}', space=vmem, size = 0x2000, scoped, tag = 'input window, operand 1, single buffered']
    #allocation5 [shape = 's32[1]{0}', space=sflag, size = 0x4, scoped, tag = 'scoped memory for tpu_custom_call.1']
    %12 = vsyncpa [#allocation3], 0
    %13 = vsyncpa [#allocation5], 0
    // Predicated region
    $region2: #{tpu_custom_call.1} parent=1 // pred_check
      _
    $region3: #{tpu_custom_call.1} parent=1 // pred_check_branch
      %15 = sbr.rel (0) target = $region5
    $region4: #{tpu_custom_call.1} parent=1 // pred_region
      %s17 = ssub.s32 128, 128
      %18 = vsyncadd [#allocation3], %s17
      %s19 = sshll.u32 [#allocation2], 4
      %s20 = int_to_ptr.vmem [resolvable:$true] %s19
      %25 = dma.hbm_to_vmem [thread:$0]  %s0, 128, %s20, [#allocation3], 64, 64, 4
    $region5: #{tpu_custom_call.1} parent=1 // pred_fallthru
      _
    // Predicated region
    $region6: #{tpu_custom_call.1} parent=1 // pred_check
      _
    $region7: #{tpu_custom_call.1} parent=1 // pred_check_branch
      %27 = sbr.rel (0) target = $region9
    $region8: #{tpu_custom_call.1} parent=1 // pred_region
      %s29 = ssub.s32 256, 256
      %30 = vsyncadd [#allocation5], %s29
      %s31 = sshll.u32 [#allocation4], 4
      %s32 = int_to_ptr.vmem [resolvable:$true] %s31
      %37 = dma.hbm_to_vmem [thread:$0]  %s1, 256, %s32, [#allocation5], 64, 64, 4
    $region9: #{tpu_custom_call.1} parent=1 // pred_fallthru
      _
    // Predicated region
    $region10: #{tpu_custom_call.1} parent=1 // pred_check
      _
    $region11: #{tpu_custom_call.1} parent=1 // pred_check_branch
      %39 = sbr.rel (0) target = $region13
    $region12: #{tpu_custom_call.1} parent=1 // pred_region
      _
    $region13: #{tpu_custom_call.1} parent=1 // pred_fallthru
      _
    // Predicated region
    $region14: #{tpu_custom_call.1} parent=1 // pred_check
      _
    $region15: #{tpu_custom_call.1} parent=1 // pred_check_branch
      %41 = sbr.rel (0) target = $region17
    $region16: #{tpu_custom_call.1} parent=1 // pred_region
      _
    $region17: #{tpu_custom_call.1} parent=1 // pred_fallthru
      _
    // Predicated region
    $region18: #{tpu_custom_call.1} parent=1 // pred_check
      _
    $region19: #{tpu_custom_call.1} parent=1 // pred_check_branch
      %43 = sbr.rel (0) target = $region21
    $region20: #{tpu_custom_call.1} parent=1 // pred_region
      _
    $region21: #{tpu_custom_call.1} parent=1 // pred_fallthru
      _
    // Predicated region
    $region22: #{tpu_custom_call.1} parent=1 // pred_check
      _
    $region23: #{tpu_custom_call.1} parent=1 // pred_check_branch
      %45 = sbr.rel (0) target = $region25
    $region24: #{tpu_custom_call.1} parent=1 // pred_region
      _
    $region25: #{tpu_custom_call.1} parent=1 // pred_fallthru
      _
    // Predicated region
    $region26: #{tpu_custom_call.1} parent=1 // pred_check
      _
    $region27: #{tpu_custom_call.1} parent=1 // pred_check_branch
      %47 = sbr.rel (0) target = $region29
    $region28: #{tpu_custom_call.1} parent=1 // pred_region
      _
    $region29: #{tpu_custom_call.1} parent=1 // pred_fallthru
      _
    // Predicated region
    $region30: #{tpu_custom_call.1} parent=1 // pred_check
      _
    $region31: #{tpu_custom_call.1} parent=1 // pred_check_branch
      %49 = sbr.rel (0) target = $region33
    $region32: #{tpu_custom_call.1} parent=1 // pred_region
      %50 = dma.done [#allocation3], 128
    $region33: #{tpu_custom_call.1} parent=1 // pred_fallthru
      _
    // Predicated region
    $region34: #{tpu_custom_call.1} parent=1 // pred_check
      _
    $region35: #{tpu_custom_call.1} parent=1 // pred_check_branch
      %52 = sbr.rel (0) target = $region37
    $region36: #{tpu_custom_call.1} parent=1 // pred_region
      %53 = dma.done [#allocation5], 256
    $region37: #{tpu_custom_call.1} parent=1 // pred_fallthru
      _
    %v55 = vld [vmem:[#allocation2] sm:$0xf]
    %v56 = vld [vmem:[#allocation2 + $0x4] sm:$0xf]
    %v57 = vld [vmem:[#allocation4] sm:$0xf]
    %v58 = vld [vmem:[#allocation4 + $0x4] sm:$0xf]
    %v59 = vld [vmem:[#allocation4 + $0x8] sm:$0xf]
    %v60 = vld [vmem:[#allocation4 + $0xc] sm:$0xf]
    %v61 = vld [vmem:[%s2] sm:$0x1]
    %v63 = vlaneseq
    %v64 = vshrl.u32 %v63, 7
    %v65 = vsub.s32 0, %v64
    %v66 = vrot.slane %v61, %v65
    %v70 = vunpack.c.l.b16 %v55
    %v71 = vunpack.c.l.b16 %v56
    %v72 = vpack.c.b16 %v71, %v70
    %v77 = vunpack.c.l.b16 %v57
    %v78 = vunpack.c.l.b16 %v58
    %v79 = vunpack.c.l.b16 %v59
    %v80 = vunpack.c.l.b16 %v60
    %v81 = vpack.c.b16 %v78, %v77
    %v82 = vpack.c.b16 %v80, %v79
    %vm85 = vcmask 261120
    %v87 = vsel %vm85, %v72, 0
    %89 = vmatprep.subr.bf16.mxu0 0
    %90 = vmatpush1.bf16.msra.mxu0 0
    %91 = vmatprep.subr.bf16.mxu0 0
    %92 = vmatpush1.bf16.msra.mxu0 0
    %93 = vmatprep.subr.bf16.mxu0 0
    %94 = vmatpush1.bf16.msra.mxu0 0
    %95 = vmatprep.subr.bf16.mxu0 0
    %96 = vmatpush1.bf16.msra.mxu0 0
    %97 = vmatprep.subr.bf16.mxu0 0
    %98 = vmatpush1.bf16.msra.mxu0 0
    %99 = vmatprep.subr.bf16.mxu0 0
    %100 = vmatpush1.bf16.msra.mxu0 0
    %101 = vmatprep.subr.bf16.mxu0 0
    %102 = vmatpush1.bf16.msra.mxu0 %v82
    %103 = vmatprep.subr.bf16.mxu0 0
    %104 = vmatpush1.bf16.msra.mxu0 %v81
    %105 = vmatprep.subr.bf16.mxu0 0
    %106 = vmatpush2.bf16.msra.mxu0 0
    %107 = vmatprep.subr.bf16.mxu0 0
    %108 = vmatpush2.bf16.msra.mxu0 0
    %109 = vmatprep.subr.bf16.mxu0 0
    %110 = vmatpush2.bf16.msra.mxu0 0
    %111 = vmatprep.subr.bf16.mxu0 0
    %112 = vmatpush2.bf16.msra.mxu0 0
    %113 = vmatprep.subr.bf16.mxu0 0
    %114 = vmatpush2.bf16.msra.mxu0 0
    %115 = vmatprep.subr.bf16.mxu0 0
    %116 = vmatpush2.bf16.msra.mxu0 0
    %117 = vmatprep.subr.bf16.mxu0 0
    %118 = vmatpush2.bf16.msra.mxu0 0
    %119 = vmatprep.subr.bf16.mxu0 0
    %120 = vmatpush2.bf16.msra.mxu0 0
    %121 = vmatprep.mubr.bf16.mxu0 0
    %122 = vmatmul.mubr.bf16.gmra.mxu0 %v87
    %v123 = vpop.f32.mrf.mxu0
    %v124 = vadd.f32 %v66, %v123
    %v125 = vpop.f32.mrf.mxu0
    %v126 = vpop.f32.mrf.mxu0
    %v127 = vadd.f32 %v66, %v126
    %v128 = vpop.f32.mrf.mxu0
    %129 = vdwg.mxu0
    %v130 = vmax.f32 %v124, 0.0
    %v131 = vmax.f32 %v127, 0.0
    %v132 = vpack.c.bf16 %v131, %v130
    %v133 = vld [vmem:[%s3] sm:$0xf]
    %v134 = vld [vmem:[%s3 + $0x4] sm:$0xf]
    %v135 = vld [vmem:[%s3 + $0x8] sm:$0xf]
    %v136 = vld [vmem:[%s3 + $0xc] sm:$0xf]
    %v137 = vld [vmem:[%s3 + $0x10] sm:$0xf]
    %v138 = vld [vmem:[%s3 + $0x14] sm:$0xf]
    %v139 = vld [vmem:[%s3 + $0x18] sm:$0xf]
    %v140 = vld [vmem:[%s3 + $0x1c] sm:$0xf]
    %v141 = vld [vmem:[%s3 + $0x20] sm:$0xf]
    %v142 = vld [vmem:[%s3 + $0x24] sm:$0xf]
    %v143 = vld [vmem:[%s3 + $0x28] sm:$0xf]
    %v144 = vld [vmem:[%s3 + $0x2c] sm:$0xf]
    %v145 = vld [vmem:[%s3 + $0x30] sm:$0xf]
    %v146 = vld [vmem:[%s3 + $0x34] sm:$0xf]
    %v147 = vld [vmem:[%s3 + $0x38] sm:$0xf]
    %v148 = vld [vmem:[%s3 + $0x3c] sm:$0xf]
    %v149 = vld [vmem:[%s4] sm:$0x1]
    %v151 = vlaneseq
    %v152 = vshrl.u32 %v151, 7
    %v153 = vsub.s32 0, %v152
    %v154 = vrot.slane %v149, %v153
    %v172 = vunpack.c.l.b16 %v133
    %v173 = vunpack.c.l.b16 %v134
    %v174 = vunpack.c.l.b16 %v135
    %v175 = vunpack.c.l.b16 %v136
    %v176 = vunpack.c.l.b16 %v137
    %v177 = vunpack.c.l.b16 %v138
    %v178 = vunpack.c.l.b16 %v139
    %v179 = vunpack.c.l.b16 %v140
    %v180 = vunpack.c.l.b16 %v141
    %v181 = vunpack.c.l.b16 %v142
    %v182 = vunpack.c.l.b16 %v143
    %v183 = vunpack.c.l.b16 %v144
    %v184 = vunpack.c.l.b16 %v145
    %v185 = vunpack.c.l.b16 %v146
    %v186 = vunpack.c.l.b16 %v147
    %v187 = vunpack.c.l.b16 %v148
    %v188 = vpack.c.b16 %v173, %v172
    %v189 = vpack.c.b16 %v175, %v174
    %v190 = vpack.c.b16 %v177, %v176
    %v191 = vpack.c.b16 %v179, %v178
    %v192 = vpack.c.b16 %v181, %v180
    %v193 = vpack.c.b16 %v183, %v182
    %v194 = vpack.c.b16 %v185, %v184
    %v195 = vpack.c.b16 %v187, %v186
    %204 = vmatprep.subr.bf16.mxu0 0
    %205 = vmatpush1.bf16.msra.mxu0 %v195
    %206 = vmatprep.subr.bf16.mxu0 0
    %207 = vmatpush1.bf16.msra.mxu0 %v194
    %208 = vmatprep.subr.bf16.mxu0 0
    %209 = vmatpush1.bf16.msra.mxu0 %v193
    %210 = vmatprep.subr.bf16.mxu0 0
    %211 = vmatpush1.bf16.msra.mxu0 %v192
    %212 = vmatprep.subr.bf16.mxu0 0
    %213 = vmatpush1.bf16.msra.mxu0 %v191
    %214 = vmatprep.subr.bf16.mxu0 0
    %215 = vmatpush1.bf16.msra.mxu0 %v190
    %216 = vmatprep.subr.bf16.mxu0 0
    %217 = vmatpush1.bf16.msra.mxu0 %v189
    %218 = vmatprep.subr.bf16.mxu0 0
    %219 = vmatpush1.bf16.msra.mxu0 %v188
    %220 = vmatprep.subr.bf16.mxu0 0
    %221 = vmatpush2.bf16.msra.mxu0 0
    %222 = vmatprep.subr.bf16.mxu0 0
    %223 = vmatpush2.bf16.msra.mxu0 0
    %224 = vmatprep.subr.bf16.mxu0 0
    %225 = vmatpush2.bf16.msra.mxu0 0
    %226 = vmatprep.subr.bf16.mxu0 0
    %227 = vmatpush2.bf16.msra.mxu0 0
    %228 = vmatprep.subr.bf16.mxu0 0
    %229 = vmatpush2.bf16.msra.mxu0 0
    %230 = vmatprep.subr.bf16.mxu0 0
    %231 = vmatpush2.bf16.msra.mxu0 0
    %232 = vmatprep.subr.bf16.mxu0 0
    %233 = vmatpush2.bf16.msra.mxu0 0
    %234 = vmatprep.subr.bf16.mxu0 0
    %235 = vmatpush2.bf16.msra.mxu0 0
    %236 = vmatprep.mubr.bf16.mxu0 0
    %237 = vmatmul.mubr.bf16.gmra.mxu0 %v132
    %v238 = vpop.f32.mrf.mxu0
    %v239 = vadd.f32 %v154, %v238
    %v240 = vpop.f32.mrf.mxu0
    %v241 = vpop.f32.mrf.mxu0
    %v242 = vadd.f32 %v154, %v241
    %v243 = vpop.f32.mrf.mxu0
    %244 = vdwg.mxu0
    %v245 = vmax.f32 %v239, 0.0
    %v246 = vmax.f32 %v242, 0.0
    %v247 = vpack.c.bf16 %v246, %v245
    %v248 = vld [vmem:[%s5] sm:$0xf]
    %v249 = vld [vmem:[%s5 + $0x4] sm:$0xf]
    %v250 = vld [vmem:[%s5 + $0x8] sm:$0xf]
    %v251 = vld [vmem:[%s5 + $0xc] sm:$0xf]
    %v252 = vld [vmem:[%s5 + $0x10] sm:$0xf]
    %v253 = vld [vmem:[%s5 + $0x14] sm:$0xf]
    %v254 = vld [vmem:[%s5 + $0x18] sm:$0xf]
    %v255 = vld [vmem:[%s5 + $0x1c] sm:$0xf]
    %v256 = vld [vmem:[%s5 + $0x20] sm:$0xf]
    %v257 = vld [vmem:[%s5 + $0x24] sm:$0xf]
    %v258 = vld [vmem:[%s5 + $0x28] sm:$0xf]
    %v259 = vld [vmem:[%s5 + $0x2c] sm:$0xf]
    %v260 = vld [vmem:[%s5 + $0x30] sm:$0xf]
    %v261 = vld [vmem:[%s5 + $0x34] sm:$0xf]
    %v262 = vld [vmem:[%s5 + $0x38] sm:$0xf]
    %v263 = vld [vmem:[%s5 + $0x3c] sm:$0xf]
    %v264 = vld [vmem:[%s6] sm:$0x1]
    %v266 = vlaneseq
    %v267 = vshrl.u32 %v266, 7
    %v268 = vsub.s32 0, %v267
    %v269 = vrot.slane %v264, %v268
    %v287 = vunpack.c.l.b16 %v248
    %v288 = vunpack.c.l.b16 %v249
    %v289 = vunpack.c.l.b16 %v250
    %v290 = vunpack.c.l.b16 %v251
    %v291 = vunpack.c.l.b16 %v252
    %v292 = vunpack.c.l.b16 %v253
    %v293 = vunpack.c.l.b16 %v254
    %v294 = vunpack.c.l.b16 %v255
    %v295 = vunpack.c.l.b16 %v256
    %v296 = vunpack.c.l.b16 %v257
    %v297 = vunpack.c.l.b16 %v258
    %v298 = vunpack.c.l.b16 %v259
    %v299 = vunpack.c.l.b16 %v260
    %v300 = vunpack.c.l.b16 %v261
    %v301 = vunpack.c.l.b16 %v262
    %v302 = vunpack.c.l.b16 %v263
    %v303 = vpack.c.b16 %v288, %v287
    %v304 = vpack.c.b16 %v290, %v289
    %v305 = vpack.c.b16 %v292, %v291
    %v306 = vpack.c.b16 %v294, %v293
    %v307 = vpack.c.b16 %v296, %v295
    %v308 = vpack.c.b16 %v298, %v297
    %v309 = vpack.c.b16 %v300, %v299
    %v310 = vpack.c.b16 %v302, %v301
    %319 = vmatprep.subr.bf16.mxu0 0
    %320 = vmatpush1.bf16.msra.mxu0 %v310
    %321 = vmatprep.subr.bf16.mxu0 0
    %322 = vmatpush1.bf16.msra.mxu0 %v309
    %323 = vmatprep.subr.bf16.mxu0 0
    %324 = vmatpush1.bf16.msra.mxu0 %v308
    %325 = vmatprep.subr.bf16.mxu0 0
    %326 = vmatpush1.bf16.msra.mxu0 %v307
    %327 = vmatprep.subr.bf16.mxu0 0
    %328 = vmatpush1.bf16.msra.mxu0 %v306
    %329 = vmatprep.subr.bf16.mxu0 0
    %330 = vmatpush1.bf16.msra.mxu0 %v305
    %331 = vmatprep.subr.bf16.mxu0 0
    %332 = vmatpush1.bf16.msra.mxu0 %v304
    %333 = vmatprep.subr.bf16.mxu0 0
    %334 = vmatpush1.bf16.msra.mxu0 %v303
    %335 = vmatprep.subr.bf16.mxu0 0
    %336 = vmatpush2.bf16.msra.mxu0 0
    %337 = vmatprep.subr.bf16.mxu0 0
    %338 = vmatpush2.bf16.msra.mxu0 0
    %339 = vmatprep.subr.bf16.mxu0 0
    %340 = vmatpush2.bf16.msra.mxu0 0
    %341 = vmatprep.subr.bf16.mxu0 0
    %342 = vmatpush2.bf16.msra.mxu0 0
    %343 = vmatprep.subr.bf16.mxu0 0
    %344 = vmatpush2.bf16.msra.mxu0 0
    %345 = vmatprep.subr.bf16.mxu0 0
    %346 = vmatpush2.bf16.msra.mxu0 0
    %347 = vmatprep.subr.bf16.mxu0 0
    %348 = vmatpush2.bf16.msra.mxu0 0
    %349 = vmatprep.subr.bf16.mxu0 0
    %350 = vmatpush2.bf16.msra.mxu0 0
    %351 = vmatprep.mubr.bf16.mxu0 0
    %352 = vmatmul.mubr.bf16.gmra.mxu0 %v247
    %v353 = vpop.f32.mrf.mxu0
    %v354 = vadd.f32 %v269, %v353
    %v355 = vpop.f32.mrf.mxu0
    %v356 = vpop.f32.mrf.mxu0
    %v357 = vadd.f32 %v269, %v356
    %v358 = vpop.f32.mrf.mxu0
    %359 = vdwg.mxu0
    %vm360 = vcmask 31744
    %361 = vst.msk [vmem:[%s7] sm:$0xff] %vm360, %v354
    %362 = vst.msk [vmem:[%s7 + $0x8] sm:$0xff] %vm360, %v357
    // Predicated region
    $region38: #{tpu_custom_call.1} parent=1 // pred_check
      _
    $region39: #{tpu_custom_call.1} parent=1 // pred_check_branch
      %364 = sbr.rel (0) target = $region41
    $region40: #{tpu_custom_call.1} parent=1 // pred_region
      _
    $region41: #{tpu_custom_call.1} parent=1 // pred_fallthru
      _
    // Predicated region
    $region42: #{tpu_custom_call.1} parent=1 // pred_check
      _
    $region43: #{tpu_custom_call.1} parent=1 // pred_check_branch
      %366 = sbr.rel (0) target = $region45
    $region44: #{tpu_custom_call.1} parent=1 // pred_region
      _
    $region45: #{tpu_custom_call.1} parent=1 // pred_fallthru
      _
    %367 = vsyncpa [#allocation3], 1
    %368 = vsyncpa [#allocation5], 1

</llo_original>
